<compile_context>
chip_gen: v7x
topology: tpu7x:2x2x1
jax: 0.10.0
libtpu: 0.0.40
codegen_flags: <defaults>
</compile_context>

<pallas_src>
import functools
import math

import jax
import jax.numpy as jnp
from jax.experimental import pallas as pl
from jax.experimental.pallas import tpu as pltpu


def _round_up(x: int, m: int) -> int:
    return (x + m - 1) // m * m


@functools.lru_cache(maxsize=1)
def _tpu_config():
    """Per-generation tiling caps and VMEM budget."""
    kind = ""
    try:
        kind = jax.devices()[0].device_kind.lower()
    except Exception:  # pragma: no cover - defensive, defaults below are safe
        pass
    if ("v5 lite" in kind) or ("v5e" in kind) or ("v5lite" in kind):
        # 4x128x128 MXU, 128 MiB VMEM, most HBM-bound -> large K/N tiles.
        return dict(mxu=128, tm_max=256, tn_max=512, tk_max=2048,
                    vmem_limit=96 << 20)
    if "v7" in kind:
        # 2x256x256 MXU, only 64 MiB physical VMEM -> keep headroom.
        return dict(mxu=256, tm_max=256, tn_max=512, tk_max=1024,
                    vmem_limit=40 << 20)
    # v6e (and default): 2x256x256 MXU, 128 MiB VMEM.
    return dict(mxu=256, tm_max=256, tn_max=512, tk_max=2048,
                vmem_limit=64 << 20)


def _pick_tile(d: int, cap: int, align: int) -> int:
    """Largest tile that is either the whole 128-rounded dim (if it fits under cap),
    or an `align`-multiple <= cap that divides round_up(d, align) — so padding never
    introduces avoidable zero columns/rows."""
    d128 = _round_up(max(d, 1), 128)
    if d128 <= cap:
        return d128
    d_al = _round_up(d, align)
    best = align
    t = align
    while t <= cap:
        if d_al % t == 0:
            best = t
        t += align
    return best


# ---------------------------------------------------------------------------
# Kernels
# ---------------------------------------------------------------------------

def _linear_kernel_inplace(x_ref, wt_ref, b_ref, o_ref):
    """f32 output: accumulate directly into the K-resident output block.

    x_ref:  (tm, tk) f32   (cast to bf16 on the VPU, hidden under the MXU)
    wt_ref: (tk, tn) bf16
    b_ref:  (1,  tn) f32
    o_ref:  (tm, tn) f32   (same block index for every K step -> VMEM resident)
    """
    kk = pl.program_id(2)

    @pl.when(kk == 0)
    def _():
        o_ref[...] = jnp.zeros_like(o_ref)

    o_ref[...] += jnp.dot(
        x_ref[...].astype(wt_ref.dtype), wt_ref[...],
        preferred_element_type=jnp.float32,
    )

    @pl.when(kk == pl.num_programs(2) - 1)
    def _():
        o_ref[...] += b_ref[...]


def _linear_kernel_acc(x_ref, wt_ref, b_ref, o_ref, acc_ref):
    """Narrow (e.g. bf16) output: f32 scratch accumulator, downcast in the epilogue."""
    kk = pl.program_id(2)

    @pl.when(kk == 0)
    def _():
        acc_ref[...] = jnp.zeros_like(acc_ref)

    acc_ref[...] += jnp.dot(
        x_ref[...].astype(wt_ref.dtype), wt_ref[...],
        preferred_element_type=jnp.float32,
    )

    @pl.when(kk == pl.num_programs(2) - 1)
    def _():
        o_ref[...] = (acc_ref[...] + b_ref[...]).astype(o_ref.dtype)


# ---------------------------------------------------------------------------
# Parameter prep & wrapper
# ---------------------------------------------------------------------------

def prepare_params(weight, bias, *, compute_dtype=jnp.bfloat16):
    """One-time parameter prep (call OUTSIDE the per-step jit):
    transpose (F_out, F_in) -> (F_in, F_out), pad K/N to tile multiples (tiles are
    chosen to divide the 128-rounded dims, so no avoidable zero padding), cast to
    the MXU compute dtype.  Returns (wt_padded, bias_padded, tn, tk)."""
    n, k = weight.shape
    cfg = _tpu_config()
    tn = _pick_tile(n, cfg["tn_max"], cfg["mxu"])
    tk = _pick_tile(k, cfg["tk_max"], cfg["mxu"])

    # Rough double-buffered VMEM footprint at the worst-case row tile; shrink tiles
    # if we would blow the per-generation budget (safety net, rarely triggers).
    def footprint(tk_, tn_):
        tm_ = cfg["tm_max"]
        return (2 * tm_ * tk_ * 4          # x tile (f32, cast in-kernel)
                + 2 * tk_ * tn_ * 2        # W^T tile (bf16)
                + 2 * tm_ * tn_ * 4        # output tile (f32)
                + tm_ * tn_ * 4            # acc scratch (bf16-output path)
                + 2 * tn_ * 4)             # bias

    while footprint(tk, tn) > 0.6 * cfg["vmem_limit"] and tk > 256:
        tk = max(256, (tk // 2 // 128) * 128)
    while footprint(tk, tn) > 0.6 * cfg["vmem_limit"] and tn > 256:
        tn = max(256, (tn // 2 // 128) * 128)

    n_pad = _round_up(n, tn)
    k_pad = _round_up(k, tk)

    wt = jnp.asarray(weight, compute_dtype).T               # (K, N)
    wt = jnp.pad(wt, ((0, k_pad - k), (0, n_pad - n)))      # (K_pad, N_pad)

    b = jnp.zeros((1, n_pad), jnp.float32)
    if bias is not None:
        b = b.at[0, :n].set(jnp.asarray(bias, jnp.float32))
    return wt, b, tn, tk


@functools.partial(jax.jit, static_argnames=("n_out", "tn", "tk", "out_dtype"))
def fixed_linear(x, wt_pad, b_pad, *, n_out, tn, tk, out_dtype=jnp.float32):
    """y = x @ W^T + b with W already prepared by `prepare_params`.

    x:      (..., F_in) float32 (kept f32; cast to bf16 inside the kernel)
    wt_pad: (K_pad, N_pad) bf16 (pre-transposed, padded weight)
    b_pad:  (1, N_pad) float32
    returns (..., F_out) in `out_dtype`
    """
    *lead, k = x.shape
    k_pad, n_pad = wt_pad.shape
    m = int(math.prod(lead)) if lead else 1
    cfg = _tpu_config()

    # Row tile: up to tm_max, 16-aligned (bf16 packs 16 rows per sublane group).
    tm = min(cfg["tm_max"], _round_up(max(m, 1), 16))
    m_pad = _round_up(m, tm)

    # Keep >=2 blocks on a parallel axis (when the work is big enough) so both
    # v7x TensorCores / megacore halves get a share.
    if (m_pad // tm) * (n_pad // tn) == 1:
        if m_pad >= 64 and (tm // 2) % 8 == 0:
            tm //= 2
        elif tn >= 256 and (tn // 2) % 128 == 0:
            tn //= 2

    # Pad the activation only when the padded grid actually requires it (no
    # wrapper-side dtype cast pass over x: the cast is done inside the kernel).
    x2d = x.reshape(m, k)
    if (m_pad, k_pad) != (m, k):
        x2d = jnp.pad(x2d, ((0, m_pad - m), (0, k_pad - k)))

    grid = (m_pad // tm, n_pad // tn, k_pad // tk)
    out_is_f32 = jnp.dtype(out_dtype) == jnp.dtype(jnp.float32)
    kernel = _linear_kernel_inplace if out_is_f32 else _linear_kernel_acc
    scratch = [] if out_is_f32 else [pltpu.VMEM((tm, tn), jnp.float32)]

    out = pl.pallas_call(
        kernel,
        out_shape=jax.ShapeDtypeStruct((m_pad, n_pad), out_dtype),
        grid_spec=pltpu.PrefetchScalarGridSpec(
            num_scalar_prefetch=0,
            grid=grid,
            in_specs=[
                pl.BlockSpec((tm, tk), lambda i, j, kk: (i, kk)),   # x tile (f32)
                pl.BlockSpec((tk, tn), lambda i, j, kk: (kk, j)),   # W^T tile (bf16)
                pl.BlockSpec((1, tn), lambda i, j, kk: (0, j)),     # bias tile
            ],
            out_specs=pl.BlockSpec((tm, tn), lambda i, j, kk: (i, j)),
            scratch_shapes=scratch,
        ),
        compiler_params=pltpu.CompilerParams(
            dimension_semantics=("parallel", "parallel", "arbitrary"),
            vmem_limit_bytes=cfg["vmem_limit"],
        ),
    )(x2d, wt_pad, b_pad)

    return out[:m, :n_out].reshape(*lead, n_out)


# ---------------------------------------------------------------------------
# Init + reference check + demo
# ---------------------------------------------------------------------------

def init_params(key, in_channels, out_channels):
    """Matches the module's default init (kaiming_uniform with a=sqrt(5), fan=in):
       weight, bias ~ U(-1/sqrt(in_channels), 1/sqrt(in_channels))."""
    kw, kb = jax.random.split(key)
    bound = 1.0 / math.sqrt(in_channels)
    weight = jax.random.uniform(
        kw, (out_channels, in_channels), jnp.float32, minval=-bound, maxval=bound
    )
    bias = jax.random.uniform(
        kb, (out_channels,), jnp.float32, minval=-bound, maxval=bound
    )
    return weight, bias


def _check(x, weight, bias, y):
    """Validate against a bf16-matched and a plain-f32 reference."""
    *lead, k = x.shape
    n = weight.shape[0]
    m = int(math.prod(lead)) if lead else 1
    y_ref_bf = (
        jnp.dot(
            x.reshape(m, k).astype(jnp.bfloat16),
            weight.astype(jnp.bfloat16).T,
            preferred_element_type=jnp.float32,
        ).reshape(*lead, n)
        + bias
    )
    y_ref_f32 = x @ weight.T + bias
    assert y.shape == tuple(lead) + (n,)
    assert jnp.allclose(y, y_ref_bf, atol=2e-3, rtol=2e-3), float(
        jnp.max(jnp.abs(y - y_ref_bf))
    )
    assert jnp.allclose(y, y_ref_f32, atol=5e-2, rtol=5e-2), float(
        jnp.max(jnp.abs(y - y_ref_f32))
    )


if __name__ == "__main__":
    key = jax.random.PRNGKey(0)

    # --- case 1: canonical small shape (batch=2, seq=8, F_in=32, F_out=64)
    in_channels, out_channels = 32, 64
    batch, seq = 2, 8
    kx, kp, key = jax.random.split(key, 3)
    x = jax.random.normal(kx, (batch, seq, in_channels), jnp.float32)
    weight, bias = init_params(kp, in_channels, out_channels)

    wt_pad, b_pad, tn, tk = prepare_params(weight, bias)
    y = fixed_linear(x, wt_pad, b_pad, n_out=out_channels, tn=tn, tk=tk)
    y = jax.block_until_ready(y)
    _check(x, weight, bias, y)

    # bf16-output path (f32 scratch accumulator, downcast epilogue)
    y_bf = fixed_linear(x, wt_pad, b_pad, n_out=out_channels, tn=tn, tk=tk,
                        out_dtype=jnp.bfloat16)
    y_bf = jax.block_until_ready(y_bf)
    assert jnp.allclose(y_bf.astype(jnp.float32), y, atol=1e-2, rtol=1e-2)

    # --- case 2: ragged, non-128-aligned shapes exercise the padding path
    in2, out2 = 40, 96
    kx2, kp2, key = jax.random.split(key, 3)
    x2 = jax.random.normal(kx2, (3, 5, in2), jnp.float32)
    w2, b2 = init_params(kp2, in2, out2)
    wt2, bb2, tn2, tk2 = prepare_params(w2, b2)
    y2 = fixed_linear(x2, wt2, bb2, n_out=out2, tn=tn2, tk=tk2)
    y2 = jax.block_until_ready(y2)
    _check(x2, w2, b2, y2)

    # --- case 3: wide-K layer exercises the multi-step K reduction + epilogue
    in3, out3 = 4096, 384
    kx3, kp3 = jax.random.split(key)
    x3 = jax.random.normal(kx3, (2, 16, in3), jnp.float32)
    w3, b3 = init_params(kp3, in3, out3)
    wt3, bb3, tn3, tk3 = prepare_params(w3, b3)
    y3 = fixed_linear(x3, wt3, bb3, n_out=out3, tn=tn3, tk=tk3)
    y3 = jax.block_until_ready(y3)
    _check(x3, w3, b3, y3)

    print("KERNEL_OK")
</pallas_src>

<mosaic_0001>
module attributes {stable_mosaic.version = 11 : i64} {
  func.func @_linear_kernel_inplace(%arg0: i32, %arg1: i32, %arg2: i32, %arg3: memref<16x128xf32, #tpu.memory_space<vmem>>, %arg4: memref<128x128xbf16, #tpu.memory_space<vmem>>, %arg5: memref<1x128xf32, #tpu.memory_space<vmem>>, %arg6: memref<16x128xf32, #tpu.memory_space<vmem>>) attributes {dimension_semantics = [#tpu.dimension_semantics<parallel>, #tpu.dimension_semantics<parallel>, #tpu.dimension_semantics<arbitrary>], iteration_bounds = array<i64: 1, 1, 1>, scalar_prefetch = 0 : i64, scratch_operands = 0 : i64, tpu.core_type = #tpu.core_type<tc>, window_params = [{transform_indices = @transform_0, window_bounds = array<i64: 16, 128>}, {transform_indices = @transform_1, window_bounds = array<i64: 128, 128>}, {transform_indices = @transform_2, window_bounds = array<i64: 1, 128>}, {transform_indices = @transform_3, window_bounds = array<i64: 16, 128>}]} {
    %c0_i32 = arith.constant 0 : i32
    %0 = arith.cmpi eq, %arg2, %c0_i32 : i32
    %1 = arith.extui %0 : i1 to i32
    %c0_i32_0 = arith.constant 0 : i32
    %2 = arith.cmpi ne, %1, %c0_i32_0 : i32
    scf.if %2 {
      %cst_10 = arith.constant 0.000000e+00 : f32
      %13 = vector.broadcast %cst_10 : f32 to vector<16x128xf32>
      %c0_11 = arith.constant 0 : index
      %c0_12 = arith.constant 0 : index
      %14 = vector.load %arg6[%c0_11, %c0_12] : memref<16x128xf32, #tpu.memory_space<vmem>>, vector<16x128xf32>
      tpu.vector_store %arg6[%c0_11, %c0_12], %13 {strides = array<i32>} : memref<16x128xf32, #tpu.memory_space<vmem>>, vector<16x128xf32>,
    } else {
    }
    %c0 = arith.constant 0 : index
    %c0_1 = arith.constant 0 : index
    %3 = vector.load %arg6[%c0, %c0_1] : memref<16x128xf32, #tpu.memory_space<vmem>>, vector<16x128xf32>
    %c0_2 = arith.constant 0 : index
    %c0_3 = arith.constant 0 : index
    %4 = vector.load %arg3[%c0_2, %c0_3] : memref<16x128xf32, #tpu.memory_space<vmem>>, vector<16x128xf32>
    %5 = arith.truncf %4 : vector<16x128xf32> to vector<16x128xbf16>
    %c0_4 = arith.constant 0 : index
    %c0_5 = arith.constant 0 : index
    %6 = vector.load %arg4[%c0_4, %c0_5] : memref<128x128xbf16, #tpu.memory_space<vmem>>, vector<128x128xbf16>
    %cst = arith.constant dense<0.000000e+00> : vector<16x128xf32>
    %7 = tpu.matmul %5, %6, %cst {dimension_numbers = #tpu.dot_dimension_numbers<[1], [0], [0], [1], [0, 0, 1, 1], [], []>} : vector<16x128xbf16>, vector<128x128xbf16>, vector<16x128xf32> -> vector<16x128xf32>
    %8 = arith.addf %3, %7 : vector<16x128xf32>
    %c0_6 = arith.constant 0 : index
    %c0_7 = arith.constant 0 : index
    %9 = vector.load %arg6[%c0_6, %c0_7] : memref<16x128xf32, #tpu.memory_space<vmem>>, vector<16x128xf32>
    tpu.vector_store %arg6[%c0_6, %c0_7], %8 {strides = array<i32>} : memref<16x128xf32, #tpu.memory_space<vmem>>, vector<16x128xf32>,
    %c0_i32_8 = arith.constant 0 : i32
    %10 = arith.cmpi eq, %arg2, %c0_i32_8 : i32
    %11 = arith.extui %10 : i1 to i32
    %c0_i32_9 = arith.constant 0 : i32
    %12 = arith.cmpi ne, %11, %c0_i32_9 : i32
    scf.if %12 {
      %c0_10 = arith.constant 0 : index
      %c0_11 = arith.constant 0 : index
      %13 = vector.load %arg6[%c0_10, %c0_11] : memref<16x128xf32, #tpu.memory_space<vmem>>, vector<16x128xf32>
      %c0_12 = arith.constant 0 : index
      %c0_13 = arith.constant 0 : index
      %14 = vector.load %arg5[%c0_12, %c0_13] : memref<1x128xf32, #tpu.memory_space<vmem>>, vector<1x128xf32>
      %15 = vector.broadcast %14 : vector<1x128xf32> to vector<16x128xf32>
      %16 = arith.addf %13, %15 : vector<16x128xf32>
      %c0_14 = arith.constant 0 : index
      %c0_15 = arith.constant 0 : index
      %17 = vector.load %arg6[%c0_14, %c0_15] : memref<16x128xf32, #tpu.memory_space<vmem>>, vector<16x128xf32>
      tpu.vector_store %arg6[%c0_14, %c0_15], %16 {strides = array<i32>} : memref<16x128xf32, #tpu.memory_space<vmem>>, vector<16x128xf32>,
    } else {
    }
    return
  }
  func.func @transform_0(%arg0: i32, %arg1: i32, %arg2: i32) -> (i32, i32) {
    %c0_i32 = arith.constant 0 : i32
    return %arg0, %arg2 : i32, i32
  }
  func.func @transform_1(%arg0: i32, %arg1: i32, %arg2: i32) -> (i32, i32) {
    %c0_i32 = arith.constant 0 : i32
    return %arg2, %arg1 : i32, i32
  }
  func.func @transform_2(%arg0: i32, %arg1: i32, %arg2: i32) -> (i32, i32) {
    %c0_i32 = arith.constant 0 : i32
    %c0_i32_0 = arith.constant 0 : i32
    return %c0_i32, %arg1 : i32, i32
  }
  func.func @transform_3(%arg0: i32, %arg1: i32, %arg2: i32) -> (i32, i32) {
    %c0_i32 = arith.constant 0 : i32
    return %arg0, %arg1 : i32, i32
  }
}

</mosaic_0001>

<llo_original>
// kernel: fixed_linear.1
$region0: #{fixed_linear.1}
  #allocation0 [shape = 'u32[]', space=smem, size = 0x4, offset = 0x4, fixed_abs, tag = 'smem constant byte address 0x4 - core index']
  #allocation1 [shape = 'u32[144,128]{1,0:T(1,128)}', space=vmem, size = 0x12000, scoped, tag = 'internal scratch']
  %s0 = inlined_call_operand.hbm [shape: f32[16,128], index: 0, kind: input, shape index: {}]
  %s1 = inlined_call_operand.hbm [shape: bf16[128,128], index: 1, kind: input, shape index: {}]
  %s2 = inlined_call_operand.hbm [shape: f32[1,128], index: 2, kind: input, shape index: {}]
  %s3 = inlined_call_operand.hbm [shape: f32[16,128], index: 3, kind: output, shape index: {}]
  %s4 = sld [smem:[#allocation0]]
  $region42: #{fixed_linear.1} parent=0
    _
  %s6 = ssub.s32 1, %s4
  %s7 = scalar_select 0, %s6, %s4
  $region1: #{fixed_linear.1} parent=0
    #allocation2 [shape = 'u8[8192]{0}', space=vmem, size = 0x2000, scoped, tag = 'input window, operand 0, single buffered']
    #allocation3 [shape = 's32[1]{0}', space=sflag, size = 0x4, scoped, tag = 'scoped memory for fixed_linear.1']
    #allocation4 [shape = 's32[1]{0}', space=sflag, size = 0x4, scoped, tag = 'scoped memory for fixed_linear.1']
    #allocation5 [shape = 'u8[32768]{0}', space=vmem, size = 0x8000, scoped, tag = 'input window, operand 1, single buffered']
    #allocation6 [shape = 's32[1]{0}', space=sflag, size = 0x4, scoped, tag = 'scoped memory for fixed_linear.1']
    #allocation7 [shape = 'u8[512]{0}', space=vmem, size = 0x400, scoped, tag = 'input window, operand 2, single buffered']
    #allocation8 [shape = 'u8[8192]{0}', space=vmem, size = 0x2000, scoped, tag = 'output window, operand 0, single buffered']
    %8 = vsyncpa [#allocation3], 0
    %9 = vsyncpa [#allocation6], 0
    %10 = vsyncpa [#allocation4], 0
    // Predicated region
    $region2: #{fixed_linear.1} parent=1 // pred_check
      _
    $region3: #{fixed_linear.1} parent=1 // pred_check_branch
      %12 = sbr.rel (0) target = $region5
    $region4: #{fixed_linear.1} parent=1 // pred_region
      %s14 = ssub.s32 256, 256
      %15 = vsyncadd [#allocation3], %s14
      %s16 = sshll.u32 [#allocation2], 4
      %s17 = int_to_ptr.vmem [resolvable:$true] %s16
      %22 = dma.hbm_to_vmem [thread:$0]  %s0, 256, %s17, [#allocation3], 128, 128, 8
    $region5: #{fixed_linear.1} parent=1 // pred_fallthru
      _
    // Predicated region
    $region6: #{fixed_linear.1} parent=1 // pred_check
      _
    $region7: #{fixed_linear.1} parent=1 // pred_check_branch
      %24 = sbr.rel (0) target = $region9
    $region8: #{fixed_linear.1} parent=1 // pred_region
      %s26 = ssub.s32 1024, 1024
      %27 = vsyncadd [#allocation6], %s26
      %s28 = sshll.u32 [#allocation5], 4
      %s29 = int_to_ptr.vmem [resolvable:$true] %s28
      %34 = dma.hbm_to_vmem [thread:$0]  %s1, 1024, %s29, [#allocation6], 64, 64, 4
    $region9: #{fixed_linear.1} parent=1 // pred_fallthru
      _
    // Predicated region
    $region10: #{fixed_linear.1} parent=1 // pred_check
      _
    $region11: #{fixed_linear.1} parent=1 // pred_check_branch
      %36 = sbr.rel (0) target = $region13
    $region12: #{fixed_linear.1} parent=1 // pred_region
      %s38 = ssub.s32 16, 16
      %39 = vsyncadd [#allocation6], %s38
      %s41 = sshll.u32 [#allocation7], 4
      %s42 = int_to_ptr.vmem [resolvable:$true] %s41
      %44 = dma.hbm_to_vmem [thread:$0]  %s2, 16, %s42, [#allocation6]
    $region13: #{fixed_linear.1} parent=1 // pred_fallthru
      _
    // Predicated region
    $region14: #{fixed_linear.1} parent=1 // pred_check
      _
    $region15: #{fixed_linear.1} parent=1 // pred_check_branch
      %46 = sbr.rel (0) target = $region17
    $region16: #{fixed_linear.1} parent=1 // pred_region
      %47 = dma.done [#allocation3], 256
    $region17: #{fixed_linear.1} parent=1 // pred_fallthru
      _
    // Predicated region
    $region18: #{fixed_linear.1} parent=1 // pred_check
      _
    $region19: #{fixed_linear.1} parent=1 // pred_check_branch
      %49 = sbr.rel (0) target = $region21
    $region20: #{fixed_linear.1} parent=1 // pred_region
      %50 = dma.done [#allocation6], 1024
    $region21: #{fixed_linear.1} parent=1 // pred_fallthru
      _
    // Predicated region
    $region22: #{fixed_linear.1} parent=1 // pred_check
      _
    $region23: #{fixed_linear.1} parent=1 // pred_check_branch
      %52 = sbr.rel (0) target = $region25
    $region24: #{fixed_linear.1} parent=1 // pred_region
      %53 = dma.done [#allocation6], 16
    $region25: #{fixed_linear.1} parent=1 // pred_fallthru
      _
    %p55 = scmp.eq.s32.totalorder 0, 0
    // Predicated region
    $region26: #{fixed_linear.1} parent=1 // pred_check
      %p56 = pneg %p55
    $region27: #{fixed_linear.1} parent=1 // pred_check_branch
      %58 = sbr.rel (%p56) target = $region29
    $region28: #{fixed_linear.1} parent=1 // pred_region
      %59 = vst [vmem:[#allocation8] sm:$0xff] 0.0
      %60 = vst [vmem:[#allocation8 + $0x8] sm:$0xff] 0.0
    $region29: #{fixed_linear.1} parent=1 // pred_fallthru
      _
    %v61 = vld [vmem:[#allocation8] sm:$0xff]
    %v62 = vld [vmem:[#allocation8 + $0x8] sm:$0xff]
    %v63 = vld [vmem:[#allocation2] sm:$0xff]
    %v64 = vld [vmem:[#allocation2 + $0x8] sm:$0xff]
    %v65 = vpack.c.bf16 %v64, %v63
    %v66 = vld [vmem:[#allocation5] sm:$0xf]
    %v67 = vld [vmem:[#allocation5 + $0x4] sm:$0xf]
    %v68 = vld [vmem:[#allocation5 + $0x8] sm:$0xf]
    %v69 = vld [vmem:[#allocation5 + $0xc] sm:$0xf]
    %v70 = vld [vmem:[#allocation5 + $0x10] sm:$0xf]
    %v71 = vld [vmem:[#allocation5 + $0x14] sm:$0xf]
    %v72 = vld [vmem:[#allocation5 + $0x18] sm:$0xf]
    %v73 = vld [vmem:[#allocation5 + $0x1c] sm:$0xf]
    %v74 = vld [vmem:[#allocation5 + $0x20] sm:$0xf]
    %v75 = vld [vmem:[#allocation5 + $0x24] sm:$0xf]
    %v76 = vld [vmem:[#allocation5 + $0x28] sm:$0xf]
    %v77 = vld [vmem:[#allocation5 + $0x2c] sm:$0xf]
    %v78 = vld [vmem:[#allocation5 + $0x30] sm:$0xf]
    %v79 = vld [vmem:[#allocation5 + $0x34] sm:$0xf]
    %v80 = vld [vmem:[#allocation5 + $0x38] sm:$0xf]
    %v81 = vld [vmem:[#allocation5 + $0x3c] sm:$0xf]
    %v98 = vunpack.c.l.b16 %v66
    %v99 = vunpack.c.l.b16 %v67
    %v100 = vunpack.c.l.b16 %v68
    %v101 = vunpack.c.l.b16 %v69
    %v102 = vunpack.c.l.b16 %v70
    %v103 = vunpack.c.l.b16 %v71
    %v104 = vunpack.c.l.b16 %v72
    %v105 = vunpack.c.l.b16 %v73
    %v106 = vunpack.c.l.b16 %v74
    %v107 = vunpack.c.l.b16 %v75
    %v108 = vunpack.c.l.b16 %v76
    %v109 = vunpack.c.l.b16 %v77
    %v110 = vunpack.c.l.b16 %v78
    %v111 = vunpack.c.l.b16 %v79
    %v112 = vunpack.c.l.b16 %v80
    %v113 = vunpack.c.l.b16 %v81
    %v114 = vpack.c.b16 %v99, %v98
    %v115 = vpack.c.b16 %v101, %v100
    %v116 = vpack.c.b16 %v103, %v102
    %v117 = vpack.c.b16 %v105, %v104
    %v118 = vpack.c.b16 %v107, %v106
    %v119 = vpack.c.b16 %v109, %v108
    %v120 = vpack.c.b16 %v111, %v110
    %v121 = vpack.c.b16 %v113, %v112
    %130 = vmatprep.subr.bf16.mxu0 0
    %131 = vmatpush1.bf16.msra.mxu0 %v114
    %132 = vmatprep.subr.bf16.mxu0 0
    %133 = vmatpush1.bf16.msra.mxu0 %v115
    %134 = vmatprep.subr.bf16.mxu0 0
    %135 = vmatpush1.bf16.msra.mxu0 %v116
    %136 = vmatprep.subr.bf16.mxu0 0
    %137 = vmatpush1.bf16.msra.mxu0 %v117
    %138 = vmatprep.subr.bf16.mxu0 0
    %139 = vmatpush1.bf16.msra.mxu0 %v118
    %140 = vmatprep.subr.bf16.mxu0 0
    %141 = vmatpush1.bf16.msra.mxu0 %v119
    %142 = vmatprep.subr.bf16.mxu0 0
    %143 = vmatpush1.bf16.msra.mxu0 %v120
    %144 = vmatprep.subr.bf16.mxu0 0
    %145 = vmatpush1.bf16.msra.mxu0 %v121
    %146 = vmatprep.subr.bf16.mxu0 0
    %147 = vmatpush1.bf16.msra.mxu0 0
    %148 = vmatprep.subr.bf16.mxu0 0
    %149 = vmatpush1.bf16.msra.mxu0 0
    %150 = vmatprep.subr.bf16.mxu0 0
    %151 = vmatpush1.bf16.msra.mxu0 0
    %152 = vmatprep.subr.bf16.mxu0 0
    %153 = vmatpush1.bf16.msra.mxu0 0
    %154 = vmatprep.subr.bf16.mxu0 0
    %155 = vmatpush1.bf16.msra.mxu0 0
    %156 = vmatprep.subr.bf16.mxu0 0
    %157 = vmatpush1.bf16.msra.mxu0 0
    %158 = vmatprep.subr.bf16.mxu0 0
    %159 = vmatpush1.bf16.msra.mxu0 0
    %160 = vmatprep.subr.bf16.mxu0 0
    %161 = vmatpush1.bf16.msra.mxu0 0
    %162 = vmatprep.mubr.bf16.mxu0 0
    %163 = vmatmul.mubr.bf16.gmra.mrb[0].mxu0 %v65
    %v164 = vpop.f32.mrb[0].mxu0
    %v165 = vadd.f32 0.0, %v164
    %v166 = vpop.f32.mrb[0].mxu0
    %v167 = vpop.f32.mrb[0].mxu0
    %v168 = vadd.f32 0.0, %v167
    %v169 = vpop.f32.mrb[0].mxu0
    %170 = vdwg.mxu0
    %v171 = vadd.f32 %v61, %v165
    %v172 = vadd.f32 %v62, %v168
    %173 = vst [vmem:[#allocation8] sm:$0xff] %v171
    %174 = vst [vmem:[#allocation8 + $0x8] sm:$0xff] %v172
    // Predicated region
    $region30: #{fixed_linear.1} parent=1 // pred_check
      %p175 = pneg %p55
    $region31: #{fixed_linear.1} parent=1 // pred_check_branch
      %177 = sbr.rel (%p175) target = $region33
    $region32: #{fixed_linear.1} parent=1 // pred_region
      %v178 = vld [vmem:[#allocation8] sm:$0xff]
      %v179 = vld [vmem:[#allocation8 + $0x8] sm:$0xff]
      %v180 = vld [vmem:[#allocation7] sm:$0x1]
      %v182 = vlaneseq
      %v183 = vshrl.u32 %v182, 7
      %v184 = vsub.s32 0, %v183
      %v185 = vrot.slane %v180, %v184
      %v187 = vadd.f32 %v178, %v185
      %v188 = vadd.f32 %v179, %v185
      %189 = vst [vmem:[#allocation8] sm:$0xff] %v187
      %190 = vst [vmem:[#allocation8 + $0x8] sm:$0xff] %v188
    $region33: #{fixed_linear.1} parent=1 // pred_fallthru
      _
    // Predicated region
    $region34: #{fixed_linear.1} parent=1 // pred_check
      _
    $region35: #{fixed_linear.1} parent=1 // pred_check_branch
      %192 = sbr.rel (0) target = $region37
    $region36: #{fixed_linear.1} parent=1 // pred_region
      %s194 = ssub.s32 256, 256
      %195 = vsyncadd [#allocation4], %s194
      %s196 = sshll.u32 [#allocation8], 4
      %s197 = int_to_ptr.vmem [resolvable:$true] %s196
      %202 = dma.vmem_to_hbm [thread:$0]  %s197, 256, %s3, [#allocation4], 128, 128, 8
    $region37: #{fixed_linear.1} parent=1 // pred_fallthru
      _
    // Predicated region
    $region38: #{fixed_linear.1} parent=1 // pred_check
      _
    $region39: #{fixed_linear.1} parent=1 // pred_check_branch
      %204 = sbr.rel (0) target = $region41
    $region40: #{fixed_linear.1} parent=1 // pred_region
      %205 = dma.done [#allocation4], 256
    $region41: #{fixed_linear.1} parent=1 // pred_fallthru
      _
    %206 = vsyncpa [#allocation3], 1
    %207 = vsyncpa [#allocation6], 1
    %208 = vsyncpa [#allocation4], 1

</llo_original>
